<compile_context>
chip_gen: v7x
topology: tpu7x:2x2x1
jax: 0.10.0
libtpu: 0.0.40
codegen_flags: <defaults>
</compile_context>

<pallas_src>
import functools

import jax
import jax.numpy as jnp
from jax.experimental import pallas as pl
from jax.experimental.pallas import tpu as pltpu


def _round_up(x, m):
    return ((x + m - 1) // m) * m


def _cornn_kernel(u_ref, w_ref, wu_ref, bu_ref, wr_ref, br_ref,
                  out_ref, yfin_ref,
                  *, dt, gamma, epsilon, n_steps, roll_shift):
    """Single-invocation coRNN forward.

    u_ref    : (n_steps*B, D_in)  t-major: row t*B + b == u[b, t, :]
    w_ref    : (HP, HP)           [Wy^T rows 0..H-1 ; Wz^T rows H..2H-1]
               or (2*HP, HP)      stacked fallback when 2*H > 128
    wu_ref   : (D_in, HP)         Wu^T (zero-padded)
    bu_ref   : (1, HP)
    wr_ref   : (HP, OP)           Wr^T (zero-padded)
    br_ref   : (1, OP)
    out_ref  : (B, OP)
    yfin_ref : (B, HP)
    """
    B, hp = yfin_ref.shape

    # Hoisted input projection: one big MXU matmul for every (t, b) row, off
    # the recurrent critical path, kept entirely in vregs (tiny at these
    # shapes -> no VMEM scratch round-trips on the serial chain).
    pre_all = (
        jnp.dot(u_ref[...], wu_ref[...], preferred_element_type=jnp.float32)
        + bu_ref[...])                                    # (n_steps*B, HP)

    w = w_ref[...]

    # Pre-folded scalar coefficients (compile-time Python constants).
    c_z = 1.0 - dt * epsilon
    c_y = dt * gamma

    y = jnp.zeros((B, hp), jnp.float32)
    z = jnp.zeros((B, hp), jnp.float32)

    # Fully unrolled recurrence (n_steps is a small static trip count); one
    # MXU matmul per step, state stays in vregs.
    for t in range(n_steps):
        # Contiguous, tile-aligned rows for time step t, all batches.
        pre_u_t = pre_all[t * B:(t + 1) * B, :]
        if roll_shift is not None:
            # 2*H <= 128: y occupies lanes [0, H); the XLU roll (free slot)
            # places z at lanes [H, 2H), so ONE K=128 MXU pass computes
            # y @ Wy^T + z @ Wz^T.  Padded lanes of y/z are zero, so the
            # rolled-in lanes are zero and the pack is exact.
            lhs = y + pltpu.roll(z, roll_shift, 1)
        else:
            lhs = jnp.concatenate([y, z], axis=1)         # (B, 2*HP) fallback
        pre = jnp.dot(lhs, w, preferred_element_type=jnp.float32) + pre_u_t
        y_new = y + dt * z
        z = c_z * z + dt * jnp.tanh(pre) - c_y * y
        y = y_new

    # Fused readout (dropout p=0.0 is identity).  Unconditional, lane-dense
    # (128-wide) stores.
    out_ref[...] = (
        jnp.dot(y, wr_ref[...], preferred_element_type=jnp.float32)
        + br_ref[...])
    yfin_ref[...] = y


def pack_params(params, input_size, hidden_size, output_size):
    """Stack + zero-pad PyTorch-layout params for the kernel.

    Padding H/O up to 128 lanes keeps every vreg / MXU tile lane-dense; the
    padded rows/columns are zero, so the padded part of the state stays
    exactly zero and results are unchanged after slicing.
    """
    wy, wz, wu, bu, wr, br = params
    H, O, D = hidden_size, output_size, input_size
    HP = _round_up(H, 128)
    OP = _round_up(O, 128)

    if 2 * H <= 128:
        # Single 128x128 recurrent weight tile -> one K=128 MXU pass per step
        # (a single weight pass even on v5e's 128-deep MXU).
        w_rec = jnp.zeros((HP, HP), jnp.float32)
        w_rec = w_rec.at[:H, :H].set(wy.T)                # y-block (lanes 0..H-1)
        w_rec = w_rec.at[H:2 * H, :H].set(wz.T)           # z-block (lanes H..2H-1)
        roll_shift = H
    else:
        # Fallback: stacked [Wy^T ; Wz^T] with K = 2*HP.
        w_rec = jnp.zeros((2 * HP, HP), jnp.float32)
        w_rec = w_rec.at[:H, :H].set(wy.T)
        w_rec = w_rec.at[HP:HP + H, :H].set(wz.T)
        roll_shift = None

    wu_t = jnp.zeros((D, HP), jnp.float32).at[:, :H].set(wu.T)
    bu_p = jnp.zeros((1, HP), jnp.float32).at[0, :H].set(bu)
    wr_t = jnp.zeros((HP, OP), jnp.float32).at[:H, :O].set(wr.T)
    br_p = jnp.zeros((1, OP), jnp.float32).at[0, :O].set(br)
    # TODO(synk): at large H (HP >= ~1024), cast weights to bf16 (keep f32
    # state / preferred_element_type=f32), set an explicit
    # pltpu.CompilerParams(vmem_limit_bytes=...), and re-derive tiling against
    # v7x's 64 MiB VMEM; also spill pre_all back to a VMEM scratch there.
    return (w_rec, wu_t, bu_p, wr_t, br_p), HP, OP, roll_shift


def cornn_forward(u, params, *, dt=1.0, gamma=1.0, epsilon=1.0):
    """u: (B, T, input_size) float32.  Returns (output (B, O), y (B, H))."""
    B, T, D_in = u.shape
    wy, wz, wu, bu, wr, br = params
    H = wy.shape[0]
    O = wr.shape[0]

    # Faithful to PyTorch: `for t in range(u.size(0))` indexing u[:, t, :]
    # -> time extent is B, which must not exceed T.
    n_steps = B
    assert T >= n_steps, "coRNN.forward indexes u[:, t, :] for t in range(B)"

    (w_rec, wu_t, bu_p, wr_t, br_p), HP, OP, roll_shift = pack_params(
        params, D_in, H, O)

    # Only the time steps actually read, reordered t-major (tiny XLA transpose
    # off the sequential path): row t*B + b == u[b, t, :].
    u_tm = jnp.transpose(u[:, :n_steps, :], (1, 0, 2))
    u2d = u_tm.reshape(n_steps * B, D_in).astype(jnp.float32)

    kernel = functools.partial(
        _cornn_kernel, dt=float(dt), gamma=float(gamma),
        epsilon=float(epsilon), n_steps=n_steps, roll_shift=roll_shift)

    # TODO(synk): when B >= 16 on v7x, add a leading parallel batch grid axis
    # (dimension_semantics=("parallel",)) so the recurrence shards across the
    # two TensorCores; at B=8 a single invocation is strictly better.
    out_p, y_p = pl.pallas_call(
        kernel,
        out_shape=(jax.ShapeDtypeStruct((B, OP), jnp.float32),
                   jax.ShapeDtypeStruct((B, HP), jnp.float32)),
    )(u2d, w_rec, wu_t, bu_p, wr_t, br_p)

    return out_p[:, :O], y_p[:, :H]


def cornn_reference(u, params, *, dt=1.0, gamma=1.0, epsilon=1.0):
    """Pure-JAX reference mirroring the PyTorch forward."""
    wy, wz, wu, bu, wr, br = params
    B = u.shape[0]
    H = wy.shape[0]
    y = jnp.zeros((B, H), u.dtype)
    z = jnp.zeros((B, H), u.dtype)
    for t in range(B):                     # reference loops over u.size(0)
        ut = u[:, t, :]
        pre = y @ wy.T + z @ wz.T + ut @ wu.T + bu
        y_new = y + dt * z
        z = z + dt * (jnp.tanh(pre) - gamma * y - epsilon * z)
        y = y_new
    out = y @ wr.T + br
    return out, y


def init_params(key, input_size, hidden_size, output_size):
    """Deterministic synthetic init (PyTorch-style uniform ranges)."""
    ks = jax.random.split(key, 6)

    def unif(k, shape, fan_in):
        b = 1.0 / jnp.sqrt(jnp.float32(fan_in))
        return jax.random.uniform(k, shape, jnp.float32, -b, b)

    wy = unif(ks[0], (hidden_size, hidden_size), hidden_size)   # y2z.weight
    wz = unif(ks[1], (hidden_size, hidden_size), hidden_size)   # z2z.weight
    wu = unif(ks[2], (hidden_size, input_size), input_size)     # u2z.weight
    bu = unif(ks[3], (hidden_size,), input_size)                # u2z.bias
    wr = unif(ks[4], (output_size, hidden_size), hidden_size)   # readout.weight
    br = unif(ks[5], (output_size,), hidden_size)               # readout.bias
    return wy, wz, wu, bu, wr, br


if __name__ == "__main__":
    # Small shapes: batch == seq == 8 (the PyTorch loop uses u.size(0) as the
    # time extent while indexing dim 1), input_size=16, hidden=32, output=8.
    B = T = 8
    INPUT_SIZE, HIDDEN_SIZE, OUTPUT_SIZE = 16, 32, 8
    DT, GAMMA, EPSILON = 1.0, 1.0, 1.0

    key = jax.random.PRNGKey(0)
    k_u, k_p = jax.random.split(key)
    u = jax.random.normal(k_u, (B, T, INPUT_SIZE), jnp.float32)
    params = init_params(k_p, INPUT_SIZE, HIDDEN_SIZE, OUTPUT_SIZE)

    out, y_fin = cornn_forward(u, params, dt=DT, gamma=GAMMA, epsilon=EPSILON)
    jax.block_until_ready((out, y_fin))

    out_ref, y_ref = cornn_reference(u, params, dt=DT, gamma=GAMMA,
                                     epsilon=EPSILON)
    assert out.shape == (B, OUTPUT_SIZE) and y_fin.shape == (B, HIDDEN_SIZE)
    # Tolerance covers MXU vs XLA matmul rounding plus summation-order changes
    # from the fused / hoisted matmuls; a logic bug would be orders larger.
    assert jnp.allclose(out, out_ref, atol=1e-3, rtol=1e-3)
    assert jnp.allclose(y_fin, y_ref, atol=1e-3, rtol=1e-3)

    print("KERNEL_OK")
</pallas_src>

<mosaic_0001>
module attributes {stable_mosaic.version = 11 : i64} {
  func.func @_cornn_kernel(%arg0: memref<64x16xf32, #tpu.memory_space<vmem>>, %arg1: memref<128x128xf32, #tpu.memory_space<vmem>>, %arg2: memref<16x128xf32, #tpu.memory_space<vmem>>, %arg3: memref<1x128xf32, #tpu.memory_space<vmem>>, %arg4: memref<128x128xf32, #tpu.memory_space<vmem>>, %arg5: memref<1x128xf32, #tpu.memory_space<vmem>>, %arg6: memref<8x128xf32, #tpu.memory_space<vmem>>, %arg7: memref<8x128xf32, #tpu.memory_space<vmem>>) attributes {dimension_semantics = [], scalar_prefetch = 0 : i64, scratch_operands = 0 : i64, tpu.core_type = #tpu.core_type<tc>} {
    %c0 = arith.constant 0 : index
    %c0_0 = arith.constant 0 : index
    %0 = vector.load %arg0[%c0, %c0_0] : memref<64x16xf32, #tpu.memory_space<vmem>>, vector<64x16xf32>
    %c0_1 = arith.constant 0 : index
    %c0_2 = arith.constant 0 : index
    %1 = vector.load %arg2[%c0_1, %c0_2] : memref<16x128xf32, #tpu.memory_space<vmem>>, vector<16x128xf32>
    %cst = arith.constant dense<0.000000e+00> : vector<64x128xf32>
    %2 = tpu.matmul %0, %1, %cst {dimension_numbers = #tpu.dot_dimension_numbers<[1], [0], [0], [1], [0, 0, 1, 1], [], []>} : vector<64x16xf32>, vector<16x128xf32>, vector<64x128xf32> -> vector<64x128xf32>
    %c0_3 = arith.constant 0 : index
    %c0_4 = arith.constant 0 : index
    %3 = vector.load %arg3[%c0_3, %c0_4] : memref<1x128xf32, #tpu.memory_space<vmem>>, vector<1x128xf32>
    %4 = vector.broadcast %3 : vector<1x128xf32> to vector<64x128xf32>
    %5 = arith.addf %2, %4 : vector<64x128xf32>
    %c0_5 = arith.constant 0 : index
    %c0_6 = arith.constant 0 : index
    %6 = vector.load %arg1[%c0_5, %c0_6] : memref<128x128xf32, #tpu.memory_space<vmem>>, vector<128x128xf32>
    %cst_7 = arith.constant 0.000000e+00 : f32
    %7 = vector.broadcast %cst_7 : f32 to vector<8x128xf32>
    %cst_8 = arith.constant 0.000000e+00 : f32
    %8 = vector.broadcast %cst_8 : f32 to vector<8x128xf32>
    %9 = vector.extract_strided_slice %5 {offsets = [0, 0], sizes = [8, 128], strides = [1, 1]} : vector<64x128xf32> to vector<8x128xf32>
    %c32_i32 = arith.constant 32 : i32
    %10 = tpu.dynamic_rotate %8 by %c32_i32 dim 1 : vector<8x128xf32>, i32 -> vector<8x128xf32>
    %11 = arith.addf %7, %10 : vector<8x128xf32>
    %cst_9 = arith.constant dense<0.000000e+00> : vector<8x128xf32>
    %12 = tpu.matmul %11, %6, %cst_9 {dimension_numbers = #tpu.dot_dimension_numbers<[1], [0], [0], [1], [0, 0, 1, 1], [], []>} : vector<8x128xf32>, vector<128x128xf32>, vector<8x128xf32> -> vector<8x128xf32>
    %13 = arith.addf %12, %9 : vector<8x128xf32>
    %cst_10 = arith.constant 1.000000e+00 : f32
    %14 = vector.broadcast %cst_10 : f32 to vector<8x128xf32>
    %15 = arith.mulf %14, %8 : vector<8x128xf32>
    %16 = arith.addf %7, %15 : vector<8x128xf32>
    %cst_11 = arith.constant 0.000000e+00 : f32
    %17 = vector.broadcast %cst_11 : f32 to vector<8x128xf32>
    %18 = arith.mulf %17, %8 : vector<8x128xf32>
    %19 = math.tanh %13 : vector<8x128xf32>
    %cst_12 = arith.constant 1.000000e+00 : f32
    %20 = vector.broadcast %cst_12 : f32 to vector<8x128xf32>
    %21 = arith.mulf %20, %19 : vector<8x128xf32>
    %22 = arith.addf %18, %21 : vector<8x128xf32>
    %cst_13 = arith.constant 1.000000e+00 : f32
    %23 = vector.broadcast %cst_13 : f32 to vector<8x128xf32>
    %24 = arith.mulf %23, %7 : vector<8x128xf32>
    %25 = arith.subf %22, %24 : vector<8x128xf32>
    %26 = vector.extract_strided_slice %5 {offsets = [8, 0], sizes = [8, 128], strides = [1, 1]} : vector<64x128xf32> to vector<8x128xf32>
    %c32_i32_14 = arith.constant 32 : i32
    %27 = tpu.dynamic_rotate %25 by %c32_i32_14 dim 1 : vector<8x128xf32>, i32 -> vector<8x128xf32>
    %28 = arith.addf %16, %27 : vector<8x128xf32>
    %cst_15 = arith.constant dense<0.000000e+00> : vector<8x128xf32>
    %29 = tpu.matmul %28, %6, %cst_15 {dimension_numbers = #tpu.dot_dimension_numbers<[1], [0], [0], [1], [0, 0, 1, 1], [], []>} : vector<8x128xf32>, vector<128x128xf32>, vector<8x128xf32> -> vector<8x128xf32>
    %30 = arith.addf %29, %26 : vector<8x128xf32>
    %cst_16 = arith.constant 1.000000e+00 : f32
    %31 = vector.broadcast %cst_16 : f32 to vector<8x128xf32>
    %32 = arith.mulf %31, %25 : vector<8x128xf32>
    %33 = arith.addf %16, %32 : vector<8x128xf32>
    %cst_17 = arith.constant 0.000000e+00 : f32
    %34 = vector.broadcast %cst_17 : f32 to vector<8x128xf32>
    %35 = arith.mulf %34, %25 : vector<8x128xf32>
    %36 = math.tanh %30 : vector<8x128xf32>
    %cst_18 = arith.constant 1.000000e+00 : f32
    %37 = vector.broadcast %cst_18 : f32 to vector<8x128xf32>
    %38 = arith.mulf %37, %36 : vector<8x128xf32>
    %39 = arith.addf %35, %38 : vector<8x128xf32>
    %cst_19 = arith.constant 1.000000e+00 : f32
    %40 = vector.broadcast %cst_19 : f32 to vector<8x128xf32>
    %41 = arith.mulf %40, %16 : vector<8x128xf32>
    %42 = arith.subf %39, %41 : vector<8x128xf32>
    %43 = vector.extract_strided_slice %5 {offsets = [16, 0], sizes = [8, 128], strides = [1, 1]} : vector<64x128xf32> to vector<8x128xf32>
    %c32_i32_20 = arith.constant 32 : i32
    %44 = tpu.dynamic_rotate %42 by %c32_i32_20 dim 1 : vector<8x128xf32>, i32 -> vector<8x128xf32>
    %45 = arith.addf %33, %44 : vector<8x128xf32>
    %cst_21 = arith.constant dense<0.000000e+00> : vector<8x128xf32>
    %46 = tpu.matmul %45, %6, %cst_21 {dimension_numbers = #tpu.dot_dimension_numbers<[1], [0], [0], [1], [0, 0, 1, 1], [], []>} : vector<8x128xf32>, vector<128x128xf32>, vector<8x128xf32> -> vector<8x128xf32>
    %47 = arith.addf %46, %43 : vector<8x128xf32>
    %cst_22 = arith.constant 1.000000e+00 : f32
    %48 = vector.broadcast %cst_22 : f32 to vector<8x128xf32>
    %49 = arith.mulf %48, %42 : vector<8x128xf32>
    %50 = arith.addf %33, %49 : vector<8x128xf32>
    %cst_23 = arith.constant 0.000000e+00 : f32
    %51 = vector.broadcast %cst_23 : f32 to vector<8x128xf32>
    %52 = arith.mulf %51, %42 : vector<8x128xf32>
    %53 = math.tanh %47 : vector<8x128xf32>
    %cst_24 = arith.constant 1.000000e+00 : f32
    %54 = vector.broadcast %cst_24 : f32 to vector<8x128xf32>
    %55 = arith.mulf %54, %53 : vector<8x128xf32>
    %56 = arith.addf %52, %55 : vector<8x128xf32>
    %cst_25 = arith.constant 1.000000e+00 : f32
    %57 = vector.broadcast %cst_25 : f32 to vector<8x128xf32>
    %58 = arith.mulf %57, %33 : vector<8x128xf32>
    %59 = arith.subf %56, %58 : vector<8x128xf32>
    %60 = vector.extract_strided_slice %5 {offsets = [24, 0], sizes = [8, 128], strides = [1, 1]} : vector<64x128xf32> to vector<8x128xf32>
    %c32_i32_26 = arith.constant 32 : i32
    %61 = tpu.dynamic_rotate %59 by %c32_i32_26 dim 1 : vector<8x128xf32>, i32 -> vector<8x128xf32>
    %62 = arith.addf %50, %61 : vector<8x128xf32>
    %cst_27 = arith.constant dense<0.000000e+00> : vector<8x128xf32>
    %63 = tpu.matmul %62, %6, %cst_27 {dimension_numbers = #tpu.dot_dimension_numbers<[1], [0], [0], [1], [0, 0, 1, 1], [], []>} : vector<8x128xf32>, vector<128x128xf32>, vector<8x128xf32> -> vector<8x128xf32>
    %64 = arith.addf %63, %60 : vector<8x128xf32>
    %cst_28 = arith.constant 1.000000e+00 : f32
    %65 = vector.broadcast %cst_28 : f32 to vector<8x128xf32>
    %66 = arith.mulf %65, %59 : vector<8x128xf32>
    %67 = arith.addf %50, %66 : vector<8x128xf32>
    %cst_29 = arith.constant 0.000000e+00 : f32
    %68 = vector.broadcast %cst_29 : f32 to vector<8x128xf32>
    %69 = arith.mulf %68, %59 : vector<8x128xf32>
    %70 = math.tanh %64 : vector<8x128xf32>
    %cst_30 = arith.constant 1.000000e+00 : f32
    %71 = vector.broadcast %cst_30 : f32 to vector<8x128xf32>
    %72 = arith.mulf %71, %70 : vector<8x128xf32>
    %73 = arith.addf %69, %72 : vector<8x128xf32>
    %cst_31 = arith.constant 1.000000e+00 : f32
    %74 = vector.broadcast %cst_31 : f32 to vector<8x128xf32>
    %75 = arith.mulf %74, %50 : vector<8x128xf32>
    %76 = arith.subf %73, %75 : vector<8x128xf32>
    %77 = vector.extract_strided_slice %5 {offsets = [32, 0], sizes = [8, 128], strides = [1, 1]} : vector<64x128xf32> to vector<8x128xf32>
    %c32_i32_32 = arith.constant 32 : i32
    %78 = tpu.dynamic_rotate %76 by %c32_i32_32 dim 1 : vector<8x128xf32>, i32 -> vector<8x128xf32>
    %79 = arith.addf %67, %78 : vector<8x128xf32>
    %cst_33 = arith.constant dense<0.000000e+00> : vector<8x128xf32>
    %80 = tpu.matmul %79, %6, %cst_33 {dimension_numbers = #tpu.dot_dimension_numbers<[1], [0], [0], [1], [0, 0, 1, 1], [], []>} : vector<8x128xf32>, vector<128x128xf32>, vector<8x128xf32> -> vector<8x128xf32>
    %81 = arith.addf %80, %77 : vector<8x128xf32>
    %cst_34 = arith.constant 1.000000e+00 : f32
    %82 = vector.broadcast %cst_34 : f32 to vector<8x128xf32>
    %83 = arith.mulf %82, %76 : vector<8x128xf32>
    %84 = arith.addf %67, %83 : vector<8x128xf32>
    %cst_35 = arith.constant 0.000000e+00 : f32
    %85 = vector.broadcast %cst_35 : f32 to vector<8x128xf32>
    %86 = arith.mulf %85, %76 : vector<8x128xf32>
    %87 = math.tanh %81 : vector<8x128xf32>
    %cst_36 = arith.constant 1.000000e+00 : f32
    %88 = vector.broadcast %cst_36 : f32 to vector<8x128xf32>
    %89 = arith.mulf %88, %87 : vector<8x128xf32>
    %90 = arith.addf %86, %89 : vector<8x128xf32>
    %cst_37 = arith.constant 1.000000e+00 : f32
    %91 = vector.broadcast %cst_37 : f32 to vector<8x128xf32>
    %92 = arith.mulf %91, %67 : vector<8x128xf32>
    %93 = arith.subf %90, %92 : vector<8x128xf32>
    %94 = vector.extract_strided_slice %5 {offsets = [40, 0], sizes = [8, 128], strides = [1, 1]} : vector<64x128xf32> to vector<8x128xf32>
    %c32_i32_38 = arith.constant 32 : i32
    %95 = tpu.dynamic_rotate %93 by %c32_i32_38 dim 1 : vector<8x128xf32>, i32 -> vector<8x128xf32>
    %96 = arith.addf %84, %95 : vector<8x128xf32>
    %cst_39 = arith.constant dense<0.000000e+00> : vector<8x128xf32>
    %97 = tpu.matmul %96, %6, %cst_39 {dimension_numbers = #tpu.dot_dimension_numbers<[1], [0], [0], [1], [0, 0, 1, 1], [], []>} : vector<8x128xf32>, vector<128x128xf32>, vector<8x128xf32> -> vector<8x128xf32>
    %98 = arith.addf %97, %94 : vector<8x128xf32>
    %cst_40 = arith.constant 1.000000e+00 : f32
    %99 = vector.broadcast %cst_40 : f32 to vector<8x128xf32>
    %100 = arith.mulf %99, %93 : vector<8x128xf32>
    %101 = arith.addf %84, %100 : vector<8x128xf32>
    %cst_41 = arith.constant 0.000000e+00 : f32
    %102 = vector.broadcast %cst_41 : f32 to vector<8x128xf32>
    %103 = arith.mulf %102, %93 : vector<8x128xf32>
    %104 = math.tanh %98 : vector<8x128xf32>
    %cst_42 = arith.constant 1.000000e+00 : f32
    %105 = vector.broadcast %cst_42 : f32 to vector<8x128xf32>
    %106 = arith.mulf %105, %104 : vector<8x128xf32>
    %107 = arith.addf %103, %106 : vector<8x128xf32>
    %cst_43 = arith.constant 1.000000e+00 : f32
    %108 = vector.broadcast %cst_43 : f32 to vector<8x128xf32>
    %109 = arith.mulf %108, %84 : vector<8x128xf32>
    %110 = arith.subf %107, %109 : vector<8x128xf32>
    %111 = vector.extract_strided_slice %5 {offsets = [48, 0], sizes = [8, 128], strides = [1, 1]} : vector<64x128xf32> to vector<8x128xf32>
    %c32_i32_44 = arith.constant 32 : i32
    %112 = tpu.dynamic_rotate %110 by %c32_i32_44 dim 1 : vector<8x128xf32>, i32 -> vector<8x128xf32>
    %113 = arith.addf %101, %112 : vector<8x128xf32>
    %cst_45 = arith.constant dense<0.000000e+00> : vector<8x128xf32>
    %114 = tpu.matmul %113, %6, %cst_45 {dimension_numbers = #tpu.dot_dimension_numbers<[1], [0], [0], [1], [0, 0, 1, 1], [], []>} : vector<8x128xf32>, vector<128x128xf32>, vector<8x128xf32> -> vector<8x128xf32>
    %115 = arith.addf %114, %111 : vector<8x128xf32>
    %cst_46 = arith.constant 1.000000e+00 : f32
    %116 = vector.broadcast %cst_46 : f32 to vector<8x128xf32>
    %117 = arith.mulf %116, %110 : vector<8x128xf32>
    %118 = arith.addf %101, %117 : vector<8x128xf32>
    %cst_47 = arith.constant 0.000000e+00 : f32
    %119 = vector.broadcast %cst_47 : f32 to vector<8x128xf32>
    %120 = arith.mulf %119, %110 : vector<8x128xf32>
    %121 = math.tanh %115 : vector<8x128xf32>
    %cst_48 = arith.constant 1.000000e+00 : f32
    %122 = vector.broadcast %cst_48 : f32 to vector<8x128xf32>
    %123 = arith.mulf %122, %121 : vector<8x128xf32>
    %124 = arith.addf %120, %123 : vector<8x128xf32>
    %cst_49 = arith.constant 1.000000e+00 : f32
    %125 = vector.broadcast %cst_49 : f32 to vector<8x128xf32>
    %126 = arith.mulf %125, %101 : vector<8x128xf32>
    %127 = arith.subf %124, %126 : vector<8x128xf32>
    %cst_50 = arith.constant 1.000000e+00 : f32
    %128 = vector.broadcast %cst_50 : f32 to vector<8x128xf32>
    %129 = arith.mulf %128, %127 : vector<8x128xf32>
    %130 = arith.addf %118, %129 : vector<8x128xf32>
    %c0_51 = arith.constant 0 : index
    %c0_52 = arith.constant 0 : index
    %131 = vector.load %arg4[%c0_51, %c0_52] : memref<128x128xf32, #tpu.memory_space<vmem>>, vector<128x128xf32>
    %cst_53 = arith.constant dense<0.000000e+00> : vector<8x128xf32>
    %132 = tpu.matmul %130, %131, %cst_53 {dimension_numbers = #tpu.dot_dimension_numbers<[1], [0], [0], [1], [0, 0, 1, 1], [], []>} : vector<8x128xf32>, vector<128x128xf32>, vector<8x128xf32> -> vector<8x128xf32>
    %c0_54 = arith.constant 0 : index
    %c0_55 = arith.constant 0 : index
    %133 = vector.load %arg5[%c0_54, %c0_55] : memref<1x128xf32, #tpu.memory_space<vmem>>, vector<1x128xf32>
    %134 = vector.broadcast %133 : vector<1x128xf32> to vector<8x128xf32>
    %135 = arith.addf %132, %134 : vector<8x128xf32>
    %c0_56 = arith.constant 0 : index
    %c0_57 = arith.constant 0 : index
    %136 = vector.load %arg6[%c0_56, %c0_57] : memref<8x128xf32, #tpu.memory_space<vmem>>, vector<8x128xf32>
    tpu.vector_store %arg6[%c0_56, %c0_57], %135 {strides = array<i32>} : memref<8x128xf32, #tpu.memory_space<vmem>>, vector<8x128xf32>,
    %c0_58 = arith.constant 0 : index
    %c0_59 = arith.constant 0 : index
    %137 = vector.load %arg7[%c0_58, %c0_59] : memref<8x128xf32, #tpu.memory_space<vmem>>, vector<8x128xf32>
    tpu.vector_store %arg7[%c0_58, %c0_59], %130 {strides = array<i32>} : memref<8x128xf32, #tpu.memory_space<vmem>>, vector<8x128xf32>,
    return
  }
}

</mosaic_0001>

<llo_original>
// kernel: tpu_custom_call.1
$region0: #{tpu_custom_call.1}
  #allocation0 [shape = 'u32[]', space=smem, size = 0x4, offset = 0x4, fixed_abs, tag = 'smem constant byte address 0x4 - core index']
  #allocation1 [shape = 'u32[144,128]{1,0:T(1,128)}', space=vmem, size = 0x12000, scoped, tag = 'internal scratch']
  %s0 = inlined_call_operand.vmem [shape: f32[64,16], index: 0, kind: input, shape index: {}]
  %s1 = inlined_call_operand.hbm [shape: f32[128,128], index: 1, kind: input, shape index: {}]
  %s2 = inlined_call_operand.vmem [shape: f32[16,128], index: 2, kind: input, shape index: {}]
  %s3 = inlined_call_operand.vmem [shape: f32[1,128], index: 3, kind: input, shape index: {}]
  %s4 = inlined_call_operand.hbm [shape: f32[128,128], index: 4, kind: input, shape index: {}]
  %s5 = inlined_call_operand.vmem [shape: f32[1,128], index: 5, kind: input, shape index: {}]
  %s6 = inlined_call_operand.hbm [shape: f32[8,128], index: 6, kind: output, shape index: {0}]
  %s7 = inlined_call_operand.hbm [shape: f32[8,128], index: 7, kind: output, shape index: {1}]
  %8 = xla_tuple %s6, %s7
  %s9 = sld [smem:[#allocation0]]
  $region50: #{tpu_custom_call.1} parent=0
    _
  %s11 = ssub.s32 1, %s9
  %s12 = scalar_select 0, %s11, %s9
  $region1: #{tpu_custom_call.1} parent=0
    #allocation2 [shape = 'u8[65536]{0}', space=vmem, size = 0x10000, scoped, tag = 'input window, operand 1, single buffered']
    #allocation3 [shape = 's32[1]{0}', space=sflag, size = 0x4, scoped, tag = 'scoped memory for tpu_custom_call.1']
    #allocation4 [shape = 's32[1]{0}', space=sflag, size = 0x4, scoped, tag = 'scoped memory for tpu_custom_call.1']
    #allocation5 [shape = 'u8[65536]{0}', space=vmem, size = 0x10000, scoped, tag = 'input window, operand 4, single buffered']
    #allocation6 [shape = 's32[1]{0}', space=sflag, size = 0x4, scoped, tag = 'scoped memory for tpu_custom_call.1']
    #allocation7 [shape = 'u8[4096]{0}', space=vmem, size = 0x1000, scoped, tag = 'output window, operand 0, single buffered']
    #allocation8 [shape = 'u8[4096]{0}', space=vmem, size = 0x1000, scoped, tag = 'output window, operand 1, single buffered']
    #allocation9 [shape = 's32[1]{0}', space=sflag, size = 0x4, scoped, tag = 'scoped memory for tpu_custom_call.1']
    %13 = vsyncpa [#allocation3], 0
    %14 = vsyncpa [#allocation6], 0
    %15 = vsyncpa [#allocation4], 0
    %16 = vsyncpa [#allocation9], 0
    // Predicated region
    $region2: #{tpu_custom_call.1} parent=1 // pred_check
      _
    $region3: #{tpu_custom_call.1} parent=1 // pred_check_branch
      %18 = sbr.rel (0) target = $region5
    $region4: #{tpu_custom_call.1} parent=1 // pred_region
      _
    $region5: #{tpu_custom_call.1} parent=1 // pred_fallthru
      _
    // Predicated region
    $region6: #{tpu_custom_call.1} parent=1 // pred_check
      _
    $region7: #{tpu_custom_call.1} parent=1 // pred_check_branch
      %20 = sbr.rel (0) target = $region9
    $region8: #{tpu_custom_call.1} parent=1 // pred_region
      %s22 = ssub.s32 2048, 2048
      %23 = vsyncadd [#allocation3], %s22
      %s24 = sshll.u32 [#allocation2], 4
      %s25 = int_to_ptr.vmem [resolvable:$true] %s24
      %30 = dma.hbm_to_vmem [thread:$0]  %s1, 2048, %s25, [#allocation3], 128, 128, 8
    $region9: #{tpu_custom_call.1} parent=1 // pred_fallthru
      _
    // Predicated region
    $region10: #{tpu_custom_call.1} parent=1 // pred_check
      _
    $region11: #{tpu_custom_call.1} parent=1 // pred_check_branch
      %32 = sbr.rel (0) target = $region13
    $region12: #{tpu_custom_call.1} parent=1 // pred_region
      _
    $region13: #{tpu_custom_call.1} parent=1 // pred_fallthru
      _
    // Predicated region
    $region14: #{tpu_custom_call.1} parent=1 // pred_check
      _
    $region15: #{tpu_custom_call.1} parent=1 // pred_check_branch
      %34 = sbr.rel (0) target = $region17
    $region16: #{tpu_custom_call.1} parent=1 // pred_region
      _
    $region17: #{tpu_custom_call.1} parent=1 // pred_fallthru
      _
    // Predicated region
    $region18: #{tpu_custom_call.1} parent=1 // pred_check
      _
    $region19: #{tpu_custom_call.1} parent=1 // pred_check_branch
      %36 = sbr.rel (0) target = $region21
    $region20: #{tpu_custom_call.1} parent=1 // pred_region
      %s38 = ssub.s32 2048, 2048
      %39 = vsyncadd [#allocation6], %s38
      %s40 = sshll.u32 [#allocation5], 4
      %s41 = int_to_ptr.vmem [resolvable:$true] %s40
      %46 = dma.hbm_to_vmem [thread:$0]  %s4, 2048, %s41, [#allocation6], 128, 128, 8
    $region21: #{tpu_custom_call.1} parent=1 // pred_fallthru
      _
    // Predicated region
    $region22: #{tpu_custom_call.1} parent=1 // pred_check
      _
    $region23: #{tpu_custom_call.1} parent=1 // pred_check_branch
      %48 = sbr.rel (0) target = $region25
    $region24: #{tpu_custom_call.1} parent=1 // pred_region
      _
    $region25: #{tpu_custom_call.1} parent=1 // pred_fallthru
      _
    // Predicated region
    $region26: #{tpu_custom_call.1} parent=1 // pred_check
      _
    $region27: #{tpu_custom_call.1} parent=1 // pred_check_branch
      %50 = sbr.rel (0) target = $region29
    $region28: #{tpu_custom_call.1} parent=1 // pred_region
      %51 = dma.done [#allocation3], 2048
    $region29: #{tpu_custom_call.1} parent=1 // pred_fallthru
      _
    // Predicated region
    $region30: #{tpu_custom_call.1} parent=1 // pred_check
      _
    $region31: #{tpu_custom_call.1} parent=1 // pred_check_branch
      %53 = sbr.rel (0) target = $region33
    $region32: #{tpu_custom_call.1} parent=1 // pred_region
      %54 = dma.done [#allocation6], 2048
    $region33: #{tpu_custom_call.1} parent=1 // pred_fallthru
      _
    %v55 = vld [vmem:[%s0] sm:$0xff]
    %v56 = vld [vmem:[%s0 + $0x8] sm:$0xff]
    %v57 = vld [vmem:[%s0 + $0x10] sm:$0xff]
    %v58 = vld [vmem:[%s0 + $0x18] sm:$0xff]
    %v59 = vld [vmem:[%s0 + $0x20] sm:$0xff]
    %v60 = vld [vmem:[%s0 + $0x28] sm:$0xff]
    %v61 = vld [vmem:[%s0 + $0x30] sm:$0xff]
    %v62 = vld [vmem:[%s0 + $0x38] sm:$0xff]
    %v63 = vld [vmem:[%s2] sm:$0xff]
    %v64 = vld [vmem:[%s2 + $0x8] sm:$0xff]
    %v65 = vld [vmem:[%s3] sm:$0x1]
    %v67 = vlaneseq
    %v68 = vshrl.u32 %v67, 7
    %v69 = vsub.s32 0, %v68
    %v70 = vrot.slane %v65, %v69
    %vm72 = vcmask 130048
    %v74 = vsel %vm72, %v55, 0
    %v77 = vsel %vm72, %v56, 0
    %v80 = vsel %vm72, %v57, 0
    %v83 = vsel %vm72, %v58, 0
    %v86 = vsel %vm72, %v59, 0
    %v89 = vsel %vm72, %v60, 0
    %v92 = vsel %vm72, %v61, 0
    %v95 = vsel %vm72, %v62, 0
    %97 = vmatprep.subr.mxu0 0.0
    %98 = vmatpush1.msra.mxu0 %v63
    %99 = vmatprep.subr.mxu0 0.0
    %100 = vmatpush1.msra.mxu0 %v64
    %101 = vmatprep.subr.mxu0 0.0
    %102 = vmatpush1.msra.mxu0 0.0
    %103 = vmatprep.subr.mxu0 0.0
    %104 = vmatpush1.msra.mxu0 0.0
    %105 = vmatprep.subr.mxu0 0.0
    %106 = vmatpush1.msra.mxu0 0.0
    %107 = vmatprep.subr.mxu0 0.0
    %108 = vmatpush1.msra.mxu0 0.0
    %109 = vmatprep.subr.mxu0 0.0
    %110 = vmatpush1.msra.mxu0 0.0
    %111 = vmatprep.subr.mxu0 0.0
    %112 = vmatpush1.msra.mxu0 0.0
    %113 = vmatprep.subr.mxu0 0.0
    %114 = vmatpush1.msra.mxu0 0.0
    %115 = vmatprep.subr.mxu0 0.0
    %116 = vmatpush1.msra.mxu0 0.0
    %117 = vmatprep.subr.mxu0 0.0
    %118 = vmatpush1.msra.mxu0 0.0
    %119 = vmatprep.subr.mxu0 0.0
    %120 = vmatpush1.msra.mxu0 0.0
    %121 = vmatprep.subr.mxu0 0.0
    %122 = vmatpush1.msra.mxu0 0.0
    %123 = vmatprep.subr.mxu0 0.0
    %124 = vmatpush1.msra.mxu0 0.0
    %125 = vmatprep.subr.mxu0 0.0
    %126 = vmatpush1.msra.mxu0 0.0
    %127 = vmatprep.subr.mxu0 0.0
    %128 = vmatpush1.msra.mxu0 0.0
    %129 = vmatprep.subr.mxu0 0.0
    %130 = vmatpush1.msra.mxu0 0.0
    %131 = vmatprep.subr.mxu0 0.0
    %132 = vmatpush1.msra.mxu0 0.0
    %133 = vmatprep.subr.mxu0 0.0
    %134 = vmatpush1.msra.mxu0 0.0
    %135 = vmatprep.subr.mxu0 0.0
    %136 = vmatpush1.msra.mxu0 0.0
    %137 = vmatprep.subr.mxu0 0.0
    %138 = vmatpush1.msra.mxu0 0.0
    %139 = vmatprep.subr.mxu0 0.0
    %140 = vmatpush1.msra.mxu0 0.0
    %141 = vmatprep.subr.mxu0 0.0
    %142 = vmatpush1.msra.mxu0 0.0
    %143 = vmatprep.subr.mxu0 0.0
    %144 = vmatpush1.msra.mxu0 0.0
    %145 = vmatprep.subr.mxu0 0.0
    %146 = vmatpush1.msra.mxu0 0.0
    %147 = vmatprep.subr.mxu0 0.0
    %148 = vmatpush1.msra.mxu0 0.0
    %149 = vmatprep.subr.mxu0 0.0
    %150 = vmatpush1.msra.mxu0 0.0
    %151 = vmatprep.subr.mxu0 0.0
    %152 = vmatpush1.msra.mxu0 0.0
    %153 = vmatprep.subr.mxu0 0.0
    %154 = vmatpush1.msra.mxu0 0.0
    %155 = vmatprep.subr.mxu0 0.0
    %156 = vmatpush1.msra.mxu0 0.0
    %157 = vmatprep.subr.mxu0 0.0
    %158 = vmatpush1.msra.mxu0 0.0
    %159 = vmatprep.subr.mxu0 0.0
    %160 = vmatpush1.msra.mxu0 0.0
    %161 = vmatprep.mubr.f32.mxu0 0.0
    %162 = vmatmul.mubr.f32.gmra.mrb[0].mxu0 %v74
    %v163 = vpop.f32.mrb[0].mxu0
    %v164 = vadd.f32 %v70, %v163
    %v165 = vpop.f32.mrb[0].mxu0
    %166 = vmatprep.mubr.f32.mxu0 0.0
    %167 = vmatmul.mubr.f32.gmra.mrb[0].mxu0 %v77
    %v168 = vpop.f32.mrb[0].mxu0
    %v169 = vadd.f32 %v70, %v168
    %v170 = vpop.f32.mrb[0].mxu0
    %171 = vmatprep.mubr.f32.mxu0 0.0
    %172 = vmatmul.mubr.f32.gmra.mrb[0].mxu0 %v80
    %v173 = vpop.f32.mrb[0].mxu0
    %v174 = vadd.f32 %v70, %v173
    %v175 = vpop.f32.mrb[0].mxu0
    %176 = vmatprep.mubr.f32.mxu0 0.0
    %177 = vmatmul.mubr.f32.gmra.mrb[0].mxu0 %v83
    %v178 = vpop.f32.mrb[0].mxu0
    %v179 = vadd.f32 %v70, %v178
    %v180 = vpop.f32.mrb[0].mxu0
    %181 = vmatprep.mubr.f32.mxu0 0.0
    %182 = vmatmul.mubr.f32.gmra.mrb[0].mxu0 %v86
    %v183 = vpop.f32.mrb[0].mxu0
    %v184 = vadd.f32 %v70, %v183
    %v185 = vpop.f32.mrb[0].mxu0
    %186 = vmatprep.mubr.f32.mxu0 0.0
    %187 = vmatmul.mubr.f32.gmra.mrb[0].mxu0 %v89
    %v188 = vpop.f32.mrb[0].mxu0
    %v189 = vadd.f32 %v70, %v188
    %v190 = vpop.f32.mrb[0].mxu0
    %191 = vmatprep.mubr.f32.mxu0 0.0
    %192 = vmatmul.mubr.f32.gmra.mrb[0].mxu0 %v92
    %v193 = vpop.f32.mrb[0].mxu0
    %v194 = vadd.f32 %v70, %v193
    %v195 = vpop.f32.mrb[0].mxu0
    %196 = vmatprep.mubr.f32.mxu0 0.0
    %197 = vmatmul.mubr.f32.gmra.mrb[0].mxu0 %v95
    %v198 = vpop.f32.mrb[0].mxu0
    %v199 = vpop.f32.mrb[0].mxu0
    %200 = vdwg.mxu0
    %v201 = vld [vmem:[#allocation2] sm:$0xff]
    %v202 = vld [vmem:[#allocation2 + $0x8] sm:$0xff]
    %v203 = vld [vmem:[#allocation2 + $0x10] sm:$0xff]
    %v204 = vld [vmem:[#allocation2 + $0x18] sm:$0xff]
    %v205 = vld [vmem:[#allocation2 + $0x20] sm:$0xff]
    %v206 = vld [vmem:[#allocation2 + $0x28] sm:$0xff]
    %v207 = vld [vmem:[#allocation2 + $0x30] sm:$0xff]
    %v208 = vld [vmem:[#allocation2 + $0x38] sm:$0xff]
    %v209 = vld [vmem:[#allocation2 + $0x40] sm:$0xff]
    %v210 = vld [vmem:[#allocation2 + $0x48] sm:$0xff]
    %v211 = vld [vmem:[#allocation2 + $0x50] sm:$0xff]
    %v212 = vld [vmem:[#allocation2 + $0x58] sm:$0xff]
    %v213 = vld [vmem:[#allocation2 + $0x60] sm:$0xff]
    %v214 = vld [vmem:[#allocation2 + $0x68] sm:$0xff]
    %v215 = vld [vmem:[#allocation2 + $0x70] sm:$0xff]
    %v216 = vld [vmem:[#allocation2 + $0x78] sm:$0xff]
    %217 = vrot.lane.b32.xlu0 0.0, 32
    %v218 = vpop.permute.xlu0 %217
    %v219 = vadd.f32 %v218, 0.0
    %220 = vmatprep.subr.mxu0 0.0
    %221 = vmatpush1.msra.mxu0 %v201
    %222 = vmatprep.subr.mxu0 0.0
    %223 = vmatpush1.msra.mxu0 %v202
    %224 = vmatprep.subr.mxu0 0.0
    %225 = vmatpush1.msra.mxu0 %v203
    %226 = vmatprep.subr.mxu0 0.0
    %227 = vmatpush1.msra.mxu0 %v204
    %228 = vmatprep.subr.mxu0 0.0
    %229 = vmatpush1.msra.mxu0 %v205
    %230 = vmatprep.subr.mxu0 0.0
    %231 = vmatpush1.msra.mxu0 %v206
    %232 = vmatprep.subr.mxu0 0.0
    %233 = vmatpush1.msra.mxu0 %v207
    %234 = vmatprep.subr.mxu0 0.0
    %235 = vmatpush1.msra.mxu0 %v208
    %236 = vmatprep.subr.mxu0 0.0
    %237 = vmatpush1.msra.mxu0 %v209
    %238 = vmatprep.subr.mxu0 0.0
    %239 = vmatpush1.msra.mxu0 %v210
    %240 = vmatprep.subr.mxu0 0.0
    %241 = vmatpush1.msra.mxu0 %v211
    %242 = vmatprep.subr.mxu0 0.0
    %243 = vmatpush1.msra.mxu0 %v212
    %244 = vmatprep.subr.mxu0 0.0
    %245 = vmatpush1.msra.mxu0 %v213
    %246 = vmatprep.subr.mxu0 0.0
    %247 = vmatpush1.msra.mxu0 %v214
    %248 = vmatprep.subr.mxu0 0.0
    %249 = vmatpush1.msra.mxu0 %v215
    %250 = vmatprep.subr.mxu0 0.0
    %251 = vmatpush1.msra.mxu0 %v216
    %252 = vmatprep.subr.mxu0 0.0
    %253 = vmatpush1.msra.mxu0 0.0
    %254 = vmatprep.subr.mxu0 0.0
    %255 = vmatpush1.msra.mxu0 0.0
    %256 = vmatprep.subr.mxu0 0.0
    %257 = vmatpush1.msra.mxu0 0.0
    %258 = vmatprep.subr.mxu0 0.0
    %259 = vmatpush1.msra.mxu0 0.0
    %260 = vmatprep.subr.mxu0 0.0
    %261 = vmatpush1.msra.mxu0 0.0
    %262 = vmatprep.subr.mxu0 0.0
    %263 = vmatpush1.msra.mxu0 0.0
    %264 = vmatprep.subr.mxu0 0.0
    %265 = vmatpush1.msra.mxu0 0.0
    %266 = vmatprep.subr.mxu0 0.0
    %267 = vmatpush1.msra.mxu0 0.0
    %268 = vmatprep.subr.mxu0 0.0
    %269 = vmatpush1.msra.mxu0 0.0
    %270 = vmatprep.subr.mxu0 0.0
    %271 = vmatpush1.msra.mxu0 0.0
    %272 = vmatprep.subr.mxu0 0.0
    %273 = vmatpush1.msra.mxu0 0.0
    %274 = vmatprep.subr.mxu0 0.0
    %275 = vmatpush1.msra.mxu0 0.0
    %276 = vmatprep.subr.mxu0 0.0
    %277 = vmatpush1.msra.mxu0 0.0
    %278 = vmatprep.subr.mxu0 0.0
    %279 = vmatpush1.msra.mxu0 0.0
    %280 = vmatprep.subr.mxu0 0.0
    %281 = vmatpush1.msra.mxu0 0.0
    %282 = vmatprep.subr.mxu0 0.0
    %283 = vmatpush1.msra.mxu0 0.0
    %284 = vmatprep.mubr.f32.mxu0 0.0
    %285 = vmatmul.mubr.f32.gmra.mrb[0].mxu0 %v219
    %v286 = vpop.f32.mrb[0].mxu0
    %v287 = vadd.f32 %v164, %v286
    %v288 = vpop.f32.mrb[0].mxu0
    %289 = vdwg.mxu0
    %v290 = vtanh.pop %v287
    %v291 = vadd.f32 %v290, 0.0
    %292 = vrot.lane.b32.xlu0 %v291, 32
    %v293 = vpop.permute.xlu0 %292
    %v294 = vadd.f32 %v293, 0.0
    %295 = vmatprep.subr.mxu0 0.0
    %296 = vmatpush1.msra.mxu0 %v201
    %297 = vmatprep.subr.mxu0 0.0
    %298 = vmatpush1.msra.mxu0 %v202
    %299 = vmatprep.subr.mxu0 0.0
    %300 = vmatpush1.msra.mxu0 %v203
    %301 = vmatprep.subr.mxu0 0.0
    %302 = vmatpush1.msra.mxu0 %v204
    %303 = vmatprep.subr.mxu0 0.0
    %304 = vmatpush1.msra.mxu0 %v205
    %305 = vmatprep.subr.mxu0 0.0
    %306 = vmatpush1.msra.mxu0 %v206
    %307 = vmatprep.subr.mxu0 0.0
    %308 = vmatpush1.msra.mxu0 %v207
    %309 = vmatprep.subr.mxu0 0.0
    %310 = vmatpush1.msra.mxu0 %v208
    %311 = vmatprep.subr.mxu0 0.0
    %312 = vmatpush1.msra.mxu0 %v209
    %313 = vmatprep.subr.mxu0 0.0
    %314 = vmatpush1.msra.mxu0 %v210
    %315 = vmatprep.subr.mxu0 0.0
    %316 = vmatpush1.msra.mxu0 %v211
    %317 = vmatprep.subr.mxu0 0.0
    %318 = vmatpush1.msra.mxu0 %v212
    %319 = vmatprep.subr.mxu0 0.0
    %320 = vmatpush1.msra.mxu0 %v213
    %321 = vmatprep.subr.mxu0 0.0
    %322 = vmatpush1.msra.mxu0 %v214
    %323 = vmatprep.subr.mxu0 0.0
    %324 = vmatpush1.msra.mxu0 %v215
    %325 = vmatprep.subr.mxu0 0.0
    %326 = vmatpush1.msra.mxu0 %v216
    %327 = vmatprep.subr.mxu0 0.0
    %328 = vmatpush1.msra.mxu0 0.0
    %329 = vmatprep.subr.mxu0 0.0
    %330 = vmatpush1.msra.mxu0 0.0
    %331 = vmatprep.subr.mxu0 0.0
    %332 = vmatpush1.msra.mxu0 0.0
    %333 = vmatprep.subr.mxu0 0.0
    %334 = vmatpush1.msra.mxu0 0.0
    %335 = vmatprep.subr.mxu0 0.0
    %336 = vmatpush1.msra.mxu0 0.0
    %337 = vmatprep.subr.mxu0 0.0
    %338 = vmatpush1.msra.mxu0 0.0
    %339 = vmatprep.subr.mxu0 0.0
    %340 = vmatpush1.msra.mxu0 0.0
    %341 = vmatprep.subr.mxu0 0.0
    %342 = vmatpush1.msra.mxu0 0.0
    %343 = vmatprep.subr.mxu0 0.0
    %344 = vmatpush1.msra.mxu0 0.0
    %345 = vmatprep.subr.mxu0 0.0
    %346 = vmatpush1.msra.mxu0 0.0
    %347 = vmatprep.subr.mxu0 0.0
    %348 = vmatpush1.msra.mxu0 0.0
    %349 = vmatprep.subr.mxu0 0.0
    %350 = vmatpush1.msra.mxu0 0.0
    %351 = vmatprep.subr.mxu0 0.0
    %352 = vmatpush1.msra.mxu0 0.0
    %353 = vmatprep.subr.mxu0 0.0
    %354 = vmatpush1.msra.mxu0 0.0
    %355 = vmatprep.subr.mxu0 0.0
    %356 = vmatpush1.msra.mxu0 0.0
    %357 = vmatprep.subr.mxu0 0.0
    %358 = vmatpush1.msra.mxu0 0.0
    %359 = vmatprep.mubr.f32.mxu0 0.0
    %360 = vmatmul.mubr.f32.gmra.mrb[0].mxu0 %v294
    %v361 = vpop.f32.mrb[0].mxu0
    %v362 = vadd.f32 %v169, %v361
    %v363 = vpop.f32.mrb[0].mxu0
    %364 = vdwg.mxu0
    %v365 = vadd.f32 %v291, 0.0
    %v366 = vmul.f32 %v291, 0.0
    %v367 = vtanh.pop %v362
    %v368 = vadd.f32 %v366, %v367
    %369 = vrot.lane.b32.xlu0 %v368, 32
    %v370 = vpop.permute.xlu0 %369
    %v371 = vadd.f32 %v365, %v370
    %372 = vmatprep.subr.mxu0 0.0
    %373 = vmatpush1.msra.mxu0 %v201
    %374 = vmatprep.subr.mxu0 0.0
    %375 = vmatpush1.msra.mxu0 %v202
    %376 = vmatprep.subr.mxu0 0.0
    %377 = vmatpush1.msra.mxu0 %v203
    %378 = vmatprep.subr.mxu0 0.0
    %379 = vmatpush1.msra.mxu0 %v204
    %380 = vmatprep.subr.mxu0 0.0
    %381 = vmatpush1.msra.mxu0 %v205
    %382 = vmatprep.subr.mxu0 0.0
    %383 = vmatpush1.msra.mxu0 %v206
    %384 = vmatprep.subr.mxu0 0.0
    %385 = vmatpush1.msra.mxu0 %v207
    %386 = vmatprep.subr.mxu0 0.0
    %387 = vmatpush1.msra.mxu0 %v208
    %388 = vmatprep.subr.mxu0 0.0
    %389 = vmatpush1.msra.mxu0 %v209
    %390 = vmatprep.subr.mxu0 0.0
    %391 = vmatpush1.msra.mxu0 %v210
    %392 = vmatprep.subr.mxu0 0.0
    %393 = vmatpush1.msra.mxu0 %v211
    %394 = vmatprep.subr.mxu0 0.0
    %395 = vmatpush1.msra.mxu0 %v212
    %396 = vmatprep.subr.mxu0 0.0
    %397 = vmatpush1.msra.mxu0 %v213
    %398 = vmatprep.subr.mxu0 0.0
    %399 = vmatpush1.msra.mxu0 %v214
    %400 = vmatprep.subr.mxu0 0.0
    %401 = vmatpush1.msra.mxu0 %v215
    %402 = vmatprep.subr.mxu0 0.0
    %403 = vmatpush1.msra.mxu0 %v216
    %404 = vmatprep.subr.mxu0 0.0
    %405 = vmatpush1.msra.mxu0 0.0
    %406 = vmatprep.subr.mxu0 0.0
    %407 = vmatpush1.msra.mxu0 0.0
    %408 = vmatprep.subr.mxu0 0.0
    %409 = vmatpush1.msra.mxu0 0.0
    %410 = vmatprep.subr.mxu0 0.0
    %411 = vmatpush1.msra.mxu0 0.0
    %412 = vmatprep.subr.mxu0 0.0
    %413 = vmatpush1.msra.mxu0 0.0
    %414 = vmatprep.subr.mxu0 0.0
    %415 = vmatpush1.msra.mxu0 0.0
    %416 = vmatprep.subr.mxu0 0.0
    %417 = vmatpush1.msra.mxu0 0.0
    %418 = vmatprep.subr.mxu0 0.0
    %419 = vmatpush1.msra.mxu0 0.0
    %420 = vmatprep.subr.mxu0 0.0
    %421 = vmatpush1.msra.mxu0 0.0
    %422 = vmatprep.subr.mxu0 0.0
    %423 = vmatpush1.msra.mxu0 0.0
    %424 = vmatprep.subr.mxu0 0.0
    %425 = vmatpush1.msra.mxu0 0.0
    %426 = vmatprep.subr.mxu0 0.0
    %427 = vmatpush1.msra.mxu0 0.0
    %428 = vmatprep.subr.mxu0 0.0
    %429 = vmatpush1.msra.mxu0 0.0
    %430 = vmatprep.subr.mxu0 0.0
    %431 = vmatpush1.msra.mxu0 0.0
    %432 = vmatprep.subr.mxu0 0.0
    %433 = vmatpush1.msra.mxu0 0.0
    %434 = vmatprep.subr.mxu0 0.0
    %435 = vmatpush1.msra.mxu0 0.0
    %436 = vmatprep.mubr.f32.mxu0 0.0
    %437 = vmatmul.mubr.f32.gmra.mrb[0].mxu0 %v371
    %v438 = vpop.f32.mrb[0].mxu0
    %v439 = vadd.f32 %v174, %v438
    %v440 = vpop.f32.mrb[0].mxu0
    %441 = vdwg.mxu0
    %v442 = vadd.f32 %v365, %v368
    %v443 = vmul.f32 %v368, 0.0
    %v444 = vtanh.pop %v439
    %v445 = vadd.f32 %v443, %v444
    %v446 = vsub.f32 %v445, %v365
    %447 = vrot.lane.b32.xlu0 %v446, 32
    %v448 = vpop.permute.xlu0 %447
    %v449 = vadd.f32 %v442, %v448
    %450 = vmatprep.subr.mxu0 0.0
    %451 = vmatpush1.msra.mxu0 %v201
    %452 = vmatprep.subr.mxu0 0.0
    %453 = vmatpush1.msra.mxu0 %v202
    %454 = vmatprep.subr.mxu0 0.0
    %455 = vmatpush1.msra.mxu0 %v203
    %456 = vmatprep.subr.mxu0 0.0
    %457 = vmatpush1.msra.mxu0 %v204
    %458 = vmatprep.subr.mxu0 0.0
    %459 = vmatpush1.msra.mxu0 %v205
    %460 = vmatprep.subr.mxu0 0.0
    %461 = vmatpush1.msra.mxu0 %v206
    %462 = vmatprep.subr.mxu0 0.0
    %463 = vmatpush1.msra.mxu0 %v207
    %464 = vmatprep.subr.mxu0 0.0
    %465 = vmatpush1.msra.mxu0 %v208
    %466 = vmatprep.subr.mxu0 0.0
    %467 = vmatpush1.msra.mxu0 %v209
    %468 = vmatprep.subr.mxu0 0.0
    %469 = vmatpush1.msra.mxu0 %v210
    %470 = vmatprep.subr.mxu0 0.0
    %471 = vmatpush1.msra.mxu0 %v211
    %472 = vmatprep.subr.mxu0 0.0
    %473 = vmatpush1.msra.mxu0 %v212
    %474 = vmatprep.subr.mxu0 0.0
    %475 = vmatpush1.msra.mxu0 %v213
    %476 = vmatprep.subr.mxu0 0.0
    %477 = vmatpush1.msra.mxu0 %v214
    %478 = vmatprep.subr.mxu0 0.0
    %479 = vmatpush1.msra.mxu0 %v215
    %480 = vmatprep.subr.mxu0 0.0
    %481 = vmatpush1.msra.mxu0 %v216
    %482 = vmatprep.subr.mxu0 0.0
    %483 = vmatpush1.msra.mxu0 0.0
    %484 = vmatprep.subr.mxu0 0.0
    %485 = vmatpush1.msra.mxu0 0.0
    %486 = vmatprep.subr.mxu0 0.0
    %487 = vmatpush1.msra.mxu0 0.0
    %488 = vmatprep.subr.mxu0 0.0
    %489 = vmatpush1.msra.mxu0 0.0
    %490 = vmatprep.subr.mxu0 0.0
    %491 = vmatpush1.msra.mxu0 0.0
    %492 = vmatprep.subr.mxu0 0.0
    %493 = vmatpush1.msra.mxu0 0.0
    %494 = vmatprep.subr.mxu0 0.0
    %495 = vmatpush1.msra.mxu0 0.0
    %496 = vmatprep.subr.mxu0 0.0
    %497 = vmatpush1.msra.mxu0 0.0
    %498 = vmatprep.subr.mxu0 0.0
    %499 = vmatpush1.msra.mxu0 0.0
    %500 = vmatprep.subr.mxu0 0.0
    %501 = vmatpush1.msra.mxu0 0.0
    %502 = vmatprep.subr.mxu0 0.0
    %503 = vmatpush1.msra.mxu0 0.0
    %504 = vmatprep.subr.mxu0 0.0
    %505 = vmatpush1.msra.mxu0 0.0
    %506 = vmatprep.subr.mxu0 0.0
    %507 = vmatpush1.msra.mxu0 0.0
    %508 = vmatprep.subr.mxu0 0.0
    %509 = vmatpush1.msra.mxu0 0.0
    %510 = vmatprep.subr.mxu0 0.0
    %511 = vmatpush1.msra.mxu0 0.0
    %512 = vmatprep.subr.mxu0 0.0
    %513 = vmatpush1.msra.mxu0 0.0
    %514 = vmatprep.mubr.f32.mxu0 0.0
    %515 = vmatmul.mubr.f32.gmra.mrb[0].mxu0 %v449
    %v516 = vpop.f32.mrb[0].mxu0
    %v517 = vadd.f32 %v179, %v516
    %v518 = vpop.f32.mrb[0].mxu0
    %519 = vdwg.mxu0
    %v520 = vadd.f32 %v442, %v446
    %v521 = vmul.f32 %v446, 0.0
    %v522 = vtanh.pop %v517
    %v523 = vadd.f32 %v521, %v522
    %v524 = vsub.f32 %v523, %v442
    %525 = vrot.lane.b32.xlu0 %v524, 32
    %v526 = vpop.permute.xlu0 %525
    %v527 = vadd.f32 %v520, %v526
    %528 = vmatprep.subr.mxu0 0.0
    %529 = vmatpush1.msra.mxu0 %v201
    %530 = vmatprep.subr.mxu0 0.0
    %531 = vmatpush1.msra.mxu0 %v202
    %532 = vmatprep.subr.mxu0 0.0
    %533 = vmatpush1.msra.mxu0 %v203
    %534 = vmatprep.subr.mxu0 0.0
    %535 = vmatpush1.msra.mxu0 %v204
    %536 = vmatprep.subr.mxu0 0.0
    %537 = vmatpush1.msra.mxu0 %v205
    %538 = vmatprep.subr.mxu0 0.0
    %539 = vmatpush1.msra.mxu0 %v206
    %540 = vmatprep.subr.mxu0 0.0
    %541 = vmatpush1.msra.mxu0 %v207
    %542 = vmatprep.subr.mxu0 0.0
    %543 = vmatpush1.msra.mxu0 %v208
    %544 = vmatprep.subr.mxu0 0.0
    %545 = vmatpush1.msra.mxu0 %v209
    %546 = vmatprep.subr.mxu0 0.0
    %547 = vmatpush1.msra.mxu0 %v210
    %548 = vmatprep.subr.mxu0 0.0
    %549 = vmatpush1.msra.mxu0 %v211
    %550 = vmatprep.subr.mxu0 0.0
    %551 = vmatpush1.msra.mxu0 %v212
    %552 = vmatprep.subr.mxu0 0.0
    %553 = vmatpush1.msra.mxu0 %v213
    %554 = vmatprep.subr.mxu0 0.0
    %555 = vmatpush1.msra.mxu0 %v214
    %556 = vmatprep.subr.mxu0 0.0
    %557 = vmatpush1.msra.mxu0 %v215
    %558 = vmatprep.subr.mxu0 0.0
    %559 = vmatpush1.msra.mxu0 %v216
    %560 = vmatprep.subr.mxu0 0.0
    %561 = vmatpush1.msra.mxu0 0.0
    %562 = vmatprep.subr.mxu0 0.0
    %563 = vmatpush1.msra.mxu0 0.0
    %564 = vmatprep.subr.mxu0 0.0
    %565 = vmatpush1.msra.mxu0 0.0
    %566 = vmatprep.subr.mxu0 0.0
    %567 = vmatpush1.msra.mxu0 0.0
    %568 = vmatprep.subr.mxu0 0.0
    %569 = vmatpush1.msra.mxu0 0.0
    %570 = vmatprep.subr.mxu0 0.0
    %571 = vmatpush1.msra.mxu0 0.0
    %572 = vmatprep.subr.mxu0 0.0
    %573 = vmatpush1.msra.mxu0 0.0
    %574 = vmatprep.subr.mxu0 0.0
    %575 = vmatpush1.msra.mxu0 0.0
    %576 = vmatprep.subr.mxu0 0.0
    %577 = vmatpush1.msra.mxu0 0.0
    %578 = vmatprep.subr.mxu0 0.0
    %579 = vmatpush1.msra.mxu0 0.0
    %580 = vmatprep.subr.mxu0 0.0
    %581 = vmatpush1.msra.mxu0 0.0
    %582 = vmatprep.subr.mxu0 0.0
    %583 = vmatpush1.msra.mxu0 0.0
    %584 = vmatprep.subr.mxu0 0.0
    %585 = vmatpush1.msra.mxu0 0.0
    %586 = vmatprep.subr.mxu0 0.0
    %587 = vmatpush1.msra.mxu0 0.0
    %588 = vmatprep.subr.mxu0 0.0
    %589 = vmatpush1.msra.mxu0 0.0
    %590 = vmatprep.subr.mxu0 0.0
    %591 = vmatpush1.msra.mxu0 0.0
    %592 = vmatprep.mubr.f32.mxu0 0.0
    %593 = vmatmul.mubr.f32.gmra.mrb[0].mxu0 %v527
    %v594 = vpop.f32.mrb[0].mxu0
    %v595 = vadd.f32 %v184, %v594
    %v596 = vpop.f32.mrb[0].mxu0
    %597 = vdwg.mxu0
    %v598 = vadd.f32 %v520, %v524
    %v599 = vmul.f32 %v524, 0.0
    %v600 = vtanh.pop %v595
    %v601 = vadd.f32 %v599, %v600
    %v602 = vsub.f32 %v601, %v520
    %603 = vrot.lane.b32.xlu0 %v602, 32
    %v604 = vpop.permute.xlu0 %603
    %v605 = vadd.f32 %v598, %v604
    %606 = vmatprep.subr.mxu0 0.0
    %607 = vmatpush1.msra.mxu0 %v201
    %608 = vmatprep.subr.mxu0 0.0
    %609 = vmatpush1.msra.mxu0 %v202
    %610 = vmatprep.subr.mxu0 0.0
    %611 = vmatpush1.msra.mxu0 %v203
    %612 = vmatprep.subr.mxu0 0.0
    %613 = vmatpush1.msra.mxu0 %v204
    %614 = vmatprep.subr.mxu0 0.0
    %615 = vmatpush1.msra.mxu0 %v205
    %616 = vmatprep.subr.mxu0 0.0
    %617 = vmatpush1.msra.mxu0 %v206
    %618 = vmatprep.subr.mxu0 0.0
    %619 = vmatpush1.msra.mxu0 %v207
    %620 = vmatprep.subr.mxu0 0.0
    %621 = vmatpush1.msra.mxu0 %v208
    %622 = vmatprep.subr.mxu0 0.0
    %623 = vmatpush1.msra.mxu0 %v209
    %624 = vmatprep.subr.mxu0 0.0
    %625 = vmatpush1.msra.mxu0 %v210
    %626 = vmatprep.subr.mxu0 0.0
    %627 = vmatpush1.msra.mxu0 %v211
    %628 = vmatprep.subr.mxu0 0.0
    %629 = vmatpush1.msra.mxu0 %v212
    %630 = vmatprep.subr.mxu0 0.0
    %631 = vmatpush1.msra.mxu0 %v213
    %632 = vmatprep.subr.mxu0 0.0
    %633 = vmatpush1.msra.mxu0 %v214
    %634 = vmatprep.subr.mxu0 0.0
    %635 = vmatpush1.msra.mxu0 %v215
    %636 = vmatprep.subr.mxu0 0.0
    %637 = vmatpush1.msra.mxu0 %v216
    %638 = vmatprep.subr.mxu0 0.0
    %639 = vmatpush1.msra.mxu0 0.0
    %640 = vmatprep.subr.mxu0 0.0
    %641 = vmatpush1.msra.mxu0 0.0
    %642 = vmatprep.subr.mxu0 0.0
    %643 = vmatpush1.msra.mxu0 0.0
    %644 = vmatprep.subr.mxu0 0.0
    %645 = vmatpush1.msra.mxu0 0.0
    %646 = vmatprep.subr.mxu0 0.0
    %647 = vmatpush1.msra.mxu0 0.0
    %648 = vmatprep.subr.mxu0 0.0
    %649 = vmatpush1.msra.mxu0 0.0
    %650 = vmatprep.subr.mxu0 0.0
    %651 = vmatpush1.msra.mxu0 0.0
    %652 = vmatprep.subr.mxu0 0.0
    %653 = vmatpush1.msra.mxu0 0.0
    %654 = vmatprep.subr.mxu0 0.0
    %655 = vmatpush1.msra.mxu0 0.0
    %656 = vmatprep.subr.mxu0 0.0
    %657 = vmatpush1.msra.mxu0 0.0
    %658 = vmatprep.subr.mxu0 0.0
    %659 = vmatpush1.msra.mxu0 0.0
    %660 = vmatprep.subr.mxu0 0.0
    %661 = vmatpush1.msra.mxu0 0.0
    %662 = vmatprep.subr.mxu0 0.0
    %663 = vmatpush1.msra.mxu0 0.0
    %664 = vmatprep.subr.mxu0 0.0
    %665 = vmatpush1.msra.mxu0 0.0
    %666 = vmatprep.subr.mxu0 0.0
    %667 = vmatpush1.msra.mxu0 0.0
    %668 = vmatprep.subr.mxu0 0.0
    %669 = vmatpush1.msra.mxu0 0.0
    %670 = vmatprep.mubr.f32.mxu0 0.0
    %671 = vmatmul.mubr.f32.gmra.mrb[0].mxu0 %v605
    %v672 = vpop.f32.mrb[0].mxu0
    %v673 = vadd.f32 %v189, %v672
    %v674 = vpop.f32.mrb[0].mxu0
    %675 = vdwg.mxu0
    %v676 = vadd.f32 %v598, %v602
    %v677 = vmul.f32 %v602, 0.0
    %v678 = vtanh.pop %v673
    %v679 = vadd.f32 %v677, %v678
    %v680 = vsub.f32 %v679, %v598
    %681 = vrot.lane.b32.xlu0 %v680, 32
    %v682 = vpop.permute.xlu0 %681
    %v683 = vadd.f32 %v676, %v682
    %684 = vmatprep.subr.mxu0 0.0
    %685 = vmatpush1.msra.mxu0 %v201
    %686 = vmatprep.subr.mxu0 0.0
    %687 = vmatpush1.msra.mxu0 %v202
    %688 = vmatprep.subr.mxu0 0.0
    %689 = vmatpush1.msra.mxu0 %v203
    %690 = vmatprep.subr.mxu0 0.0
    %691 = vmatpush1.msra.mxu0 %v204
    %692 = vmatprep.subr.mxu0 0.0
    %693 = vmatpush1.msra.mxu0 %v205
    %694 = vmatprep.subr.mxu0 0.0
    %695 = vmatpush1.msra.mxu0 %v206
    %696 = vmatprep.subr.mxu0 0.0
    %697 = vmatpush1.msra.mxu0 %v207
    %698 = vmatprep.subr.mxu0 0.0
    %699 = vmatpush1.msra.mxu0 %v208
    %700 = vmatprep.subr.mxu0 0.0
    %701 = vmatpush1.msra.mxu0 %v209
    %702 = vmatprep.subr.mxu0 0.0
    %703 = vmatpush1.msra.mxu0 %v210
    %704 = vmatprep.subr.mxu0 0.0
    %705 = vmatpush1.msra.mxu0 %v211
    %706 = vmatprep.subr.mxu0 0.0
    %707 = vmatpush1.msra.mxu0 %v212
    %708 = vmatprep.subr.mxu0 0.0
    %709 = vmatpush1.msra.mxu0 %v213
    %710 = vmatprep.subr.mxu0 0.0
    %711 = vmatpush1.msra.mxu0 %v214
    %712 = vmatprep.subr.mxu0 0.0
    %713 = vmatpush1.msra.mxu0 %v215
    %714 = vmatprep.subr.mxu0 0.0
    %715 = vmatpush1.msra.mxu0 %v216
    %716 = vmatprep.subr.mxu0 0.0
    %717 = vmatpush1.msra.mxu0 0.0
    %718 = vmatprep.subr.mxu0 0.0
    %719 = vmatpush1.msra.mxu0 0.0
    %720 = vmatprep.subr.mxu0 0.0
    %721 = vmatpush1.msra.mxu0 0.0
    %722 = vmatprep.subr.mxu0 0.0
    %723 = vmatpush1.msra.mxu0 0.0
    %724 = vmatprep.subr.mxu0 0.0
    %725 = vmatpush1.msra.mxu0 0.0
    %726 = vmatprep.subr.mxu0 0.0
    %727 = vmatpush1.msra.mxu0 0.0
    %728 = vmatprep.subr.mxu0 0.0
    %729 = vmatpush1.msra.mxu0 0.0
    %730 = vmatprep.subr.mxu0 0.0
    %731 = vmatpush1.msra.mxu0 0.0
    %732 = vmatprep.subr.mxu0 0.0
    %733 = vmatpush1.msra.mxu0 0.0
    %734 = vmatprep.subr.mxu0 0.0
    %735 = vmatpush1.msra.mxu0 0.0
    %736 = vmatprep.subr.mxu0 0.0
    %737 = vmatpush1.msra.mxu0 0.0
    %738 = vmatprep.subr.mxu0 0.0
    %739 = vmatpush1.msra.mxu0 0.0
    %740 = vmatprep.subr.mxu0 0.0
    %741 = vmatpush1.msra.mxu0 0.0
    %742 = vmatprep.subr.mxu0 0.0
    %743 = vmatpush1.msra.mxu0 0.0
    %744 = vmatprep.subr.mxu0 0.0
    %745 = vmatpush1.msra.mxu0 0.0
    %746 = vmatprep.subr.mxu0 0.0
    %747 = vmatpush1.msra.mxu0 0.0
    %748 = vmatprep.mubr.f32.mxu0 0.0
    %749 = vmatmul.mubr.f32.gmra.mrb[0].mxu0 %v683
    %v750 = vpop.f32.mrb[0].mxu0
    %v751 = vadd.f32 %v194, %v750
    %v752 = vpop.f32.mrb[0].mxu0
    %753 = vdwg.mxu0
    %v754 = vadd.f32 %v676, %v680
    %v755 = vmul.f32 %v680, 0.0
    %v756 = vtanh.pop %v751
    %v757 = vadd.f32 %v755, %v756
    %v758 = vsub.f32 %v757, %v676
    %v759 = vadd.f32 %v754, %v758
    %v760 = vld [vmem:[#allocation5] sm:$0xff]
    %v761 = vld [vmem:[#allocation5 + $0x8] sm:$0xff]
    %v762 = vld [vmem:[#allocation5 + $0x10] sm:$0xff]
    %v763 = vld [vmem:[#allocation5 + $0x18] sm:$0xff]
    %v764 = vld [vmem:[#allocation5 + $0x20] sm:$0xff]
    %v765 = vld [vmem:[#allocation5 + $0x28] sm:$0xff]
    %v766 = vld [vmem:[#allocation5 + $0x30] sm:$0xff]
    %v767 = vld [vmem:[#allocation5 + $0x38] sm:$0xff]
    %v768 = vld [vmem:[#allocation5 + $0x40] sm:$0xff]
    %v769 = vld [vmem:[#allocation5 + $0x48] sm:$0xff]
    %v770 = vld [vmem:[#allocation5 + $0x50] sm:$0xff]
    %v771 = vld [vmem:[#allocation5 + $0x58] sm:$0xff]
    %v772 = vld [vmem:[#allocation5 + $0x60] sm:$0xff]
    %v773 = vld [vmem:[#allocation5 + $0x68] sm:$0xff]
    %v774 = vld [vmem:[#allocation5 + $0x70] sm:$0xff]
    %v775 = vld [vmem:[#allocation5 + $0x78] sm:$0xff]
    %v776 = vld [vmem:[%s5] sm:$0x1]
    %v778 = vlaneseq
    %v779 = vshrl.u32 %v778, 7
    %v780 = vsub.s32 0, %v779
    %v781 = vrot.slane %v776, %v780
    %783 = vmatprep.subr.mxu0 0.0
    %784 = vmatpush1.msra.mxu0 %v760
    %785 = vmatprep.subr.mxu0 0.0
    %786 = vmatpush1.msra.mxu0 %v761
    %787 = vmatprep.subr.mxu0 0.0
    %788 = vmatpush1.msra.mxu0 %v762
    %789 = vmatprep.subr.mxu0 0.0
    %790 = vmatpush1.msra.mxu0 %v763
    %791 = vmatprep.subr.mxu0 0.0
    %792 = vmatpush1.msra.mxu0 %v764
    %793 = vmatprep.subr.mxu0 0.0
    %794 = vmatpush1.msra.mxu0 %v765
    %795 = vmatprep.subr.mxu0 0.0
    %796 = vmatpush1.msra.mxu0 %v766
    %797 = vmatprep.subr.mxu0 0.0
    %798 = vmatpush1.msra.mxu0 %v767
    %799 = vmatprep.subr.mxu0 0.0
    %800 = vmatpush1.msra.mxu0 %v768
    %801 = vmatprep.subr.mxu0 0.0
    %802 = vmatpush1.msra.mxu0 %v769
    %803 = vmatprep.subr.mxu0 0.0
    %804 = vmatpush1.msra.mxu0 %v770
    %805 = vmatprep.subr.mxu0 0.0
    %806 = vmatpush1.msra.mxu0 %v771
    %807 = vmatprep.subr.mxu0 0.0
    %808 = vmatpush1.msra.mxu0 %v772
    %809 = vmatprep.subr.mxu0 0.0
    %810 = vmatpush1.msra.mxu0 %v773
    %811 = vmatprep.subr.mxu0 0.0
    %812 = vmatpush1.msra.mxu0 %v774
    %813 = vmatprep.subr.mxu0 0.0
    %814 = vmatpush1.msra.mxu0 %v775
    %815 = vmatprep.subr.mxu0 0.0
    %816 = vmatpush1.msra.mxu0 0.0
    %817 = vmatprep.subr.mxu0 0.0
    %818 = vmatpush1.msra.mxu0 0.0
    %819 = vmatprep.subr.mxu0 0.0
    %820 = vmatpush1.msra.mxu0 0.0
    %821 = vmatprep.subr.mxu0 0.0
    %822 = vmatpush1.msra.mxu0 0.0
    %823 = vmatprep.subr.mxu0 0.0
    %824 = vmatpush1.msra.mxu0 0.0
    %825 = vmatprep.subr.mxu0 0.0
    %826 = vmatpush1.msra.mxu0 0.0
    %827 = vmatprep.subr.mxu0 0.0
    %828 = vmatpush1.msra.mxu0 0.0
    %829 = vmatprep.subr.mxu0 0.0
    %830 = vmatpush1.msra.mxu0 0.0
    %831 = vmatprep.subr.mxu0 0.0
    %832 = vmatpush1.msra.mxu0 0.0
    %833 = vmatprep.subr.mxu0 0.0
    %834 = vmatpush1.msra.mxu0 0.0
    %835 = vmatprep.subr.mxu0 0.0
    %836 = vmatpush1.msra.mxu0 0.0
    %837 = vmatprep.subr.mxu0 0.0
    %838 = vmatpush1.msra.mxu0 0.0
    %839 = vmatprep.subr.mxu0 0.0
    %840 = vmatpush1.msra.mxu0 0.0
    %841 = vmatprep.subr.mxu0 0.0
    %842 = vmatpush1.msra.mxu0 0.0
    %843 = vmatprep.subr.mxu0 0.0
    %844 = vmatpush1.msra.mxu0 0.0
    %845 = vmatprep.subr.mxu0 0.0
    %846 = vmatpush1.msra.mxu0 0.0
    %847 = vmatprep.mubr.f32.mxu0 0.0
    %848 = vmatmul.mubr.f32.gmra.mrb[0].mxu0 %v759
    %v849 = vpop.f32.mrb[0].mxu0
    %v850 = vadd.f32 %v781, %v849
    %v851 = vpop.f32.mrb[0].mxu0
    %852 = vdwg.mxu0
    %853 = vst [vmem:[#allocation7] sm:$0xff] %v850
    %854 = vst [vmem:[#allocation8] sm:$0xff] %v759
    // Predicated region
    $region34: #{tpu_custom_call.1} parent=1 // pred_check
      _
    $region35: #{tpu_custom_call.1} parent=1 // pred_check_branch
      %856 = sbr.rel (0) target = $region37
    $region36: #{tpu_custom_call.1} parent=1 // pred_region
      %s858 = ssub.s32 128, 128
      %859 = vsyncadd [#allocation4], %s858
      %s861 = sshll.u32 [#allocation7], 4
      %s862 = int_to_ptr.vmem [resolvable:$true] %s861
      %864 = dma.vmem_to_hbm [thread:$0]  %s862, 128, %s6, [#allocation4]
    $region37: #{tpu_custom_call.1} parent=1 // pred_fallthru
      _
    // Predicated region
    $region38: #{tpu_custom_call.1} parent=1 // pred_check
      _
    $region39: #{tpu_custom_call.1} parent=1 // pred_check_branch
      %866 = sbr.rel (0) target = $region41
    $region40: #{tpu_custom_call.1} parent=1 // pred_region
      %s868 = ssub.s32 128, 128
      %869 = vsyncadd [#allocation9], %s868
      %s871 = sshll.u32 [#allocation8], 4
      %s872 = int_to_ptr.vmem [resolvable:$true] %s871
      %874 = dma.vmem_to_hbm [thread:$0]  %s872, 128, %s7, [#allocation9]
    $region41: #{tpu_custom_call.1} parent=1 // pred_fallthru
      _
    // Predicated region
    $region42: #{tpu_custom_call.1} parent=1 // pred_check
      _
    $region43: #{tpu_custom_call.1} parent=1 // pred_check_branch
      %876 = sbr.rel (0) target = $region45
    $region44: #{tpu_custom_call.1} parent=1 // pred_region
      %877 = dma.done [#allocation4], 128
    $region45: #{tpu_custom_call.1} parent=1 // pred_fallthru
      _
    // Predicated region
    $region46: #{tpu_custom_call.1} parent=1 // pred_check
      _
    $region47: #{tpu_custom_call.1} parent=1 // pred_check_branch
      %879 = sbr.rel (0) target = $region49
    $region48: #{tpu_custom_call.1} parent=1 // pred_region
      %880 = dma.done [#allocation9], 128
    $region49: #{tpu_custom_call.1} parent=1 // pred_fallthru
      _
    %881 = vsyncpa [#allocation3], 1
    %882 = vsyncpa [#allocation6], 1
    %883 = vsyncpa [#allocation4], 1
    %884 = vsyncpa [#allocation9], 1

</llo_original>
